<compile_context>
chip_gen: v6e
topology: v6e:2x2x1
jax: 0.10.0
libtpu: 0.0.40
codegen_flags: <defaults>
</compile_context>

<pallas_src>
import jax
import jax.numpy as jnp
from jax.experimental import pallas as pl
from jax.experimental.pallas import tpu as pltpu


def _round_up(n, m):
    return ((n + m - 1) // m) * m


def _cdiv(a, b):
    return (a + b - 1) // b


# ---------------------------------------------------------------------------
# Kernel
# ---------------------------------------------------------------------------
def _make_kernel(action_space, negative_slope=0.01):
    """Fused policy+value forward on one batch tile."""

    def kernel(x_ref, w1_ref, b1_ref, w2_ref, b2_ref, out_ref):
        # Cast (no-op when weights are f32) happens in-kernel; the wrapper does
        # no extra HBM pass over x.
        x = x_ref[...].astype(w1_ref.dtype)                       # [TB, obs]

        # Layer 1 (both heads fused):  [TB, obs] @ [obs, H_PAD] -> [TB, H_PAD]
        h = jnp.dot(x, w1_ref[...],
                    preferred_element_type=jnp.float32) + b1_ref[...]
        h = jnp.maximum(h, negative_slope * h)                    # LeakyReLU(0.01)

        # Layer 2 (block-diagonal fused): [TB, H_PAD] @ [H_PAD, OUT_PAD]
        y = jnp.dot(h.astype(w2_ref.dtype), w2_ref[...],
                    preferred_element_type=jnp.float32) + b2_ref[...]

        # Exact softsign on the policy columns only; value column passes through.
        soft = y / (1.0 + jnp.abs(y))
        col = jax.lax.broadcasted_iota(jnp.int32, (1, y.shape[1]), 1)
        out_ref[...] = jnp.where(col < action_space, soft, y).astype(out_ref.dtype)

    return kernel


# ---------------------------------------------------------------------------
# Parameter handling
# ---------------------------------------------------------------------------
def init_params(key, obs_space, hidden_dim, action_space):
    """Deterministic init mimicking nn.Linear's uniform(-1/sqrt(fan_in), ...)."""
    ks = jax.random.split(key, 8)

    def lin(kw, kb, fan_in, fan_out):
        bound = 1.0 / jnp.sqrt(fan_in)
        w = jax.random.uniform(kw, (fan_in, fan_out), jnp.float32, -bound, bound)
        b = jax.random.uniform(kb, (1, fan_out), jnp.float32, -bound, bound)
        return w, b

    w1p, b1p = lin(ks[0], ks[1], obs_space, hidden_dim)
    w2p, b2p = lin(ks[2], ks[3], hidden_dim, action_space)
    w1v, b1v = lin(ks[4], ks[5], obs_space, hidden_dim)
    w2v, b2v = lin(ks[6], ks[7], hidden_dim, 1)
    return dict(w1p=w1p, b1p=b1p, w2p=w2p, b2p=b2p,
                w1v=w1v, b1v=b1v, w2v=w2v, b2v=b2v)


def prepare_fused_params(params, mm_dtype=jnp.float32):
    """Build (8,128)-aligned, fused weights once in the wrapper.

    mm_dtype: dtype of the matmul weights (f32 default; MXU time is negligible
    at these shapes, so f32 keeps the value head exact).  bf16 is also fine.
    """
    w1p, b1p = params["w1p"], params["b1p"]
    w2p, b2p = params["w2p"], params["b2p"]
    w1v, b1v = params["w1v"], params["b1v"]
    w2v, b2v = params["w2v"], params["b2v"]

    obs, H = w1p.shape
    A = w2p.shape[1]
    H_PAD = _round_up(2 * H, 128)          # fused hidden width (lane-dense)
    OUT_PAD = _round_up(A + 1, 128)        # fused output width  (lane-dense)

    w1 = jnp.zeros((obs, H_PAD), jnp.float32)
    w1 = w1.at[:, :H].set(w1p).at[:, H:2 * H].set(w1v)
    b1 = jnp.zeros((1, H_PAD), jnp.float32)
    b1 = b1.at[:, :H].set(b1p).at[:, H:2 * H].set(b1v)

    # Block-diagonal second layer: rows 0:H feed policy cols 0:A,
    # rows H:2H feed the value column A.
    w2 = jnp.zeros((H_PAD, OUT_PAD), jnp.float32)
    w2 = w2.at[:H, :A].set(w2p).at[H:2 * H, A:A + 1].set(w2v)
    b2 = jnp.zeros((1, OUT_PAD), jnp.float32)
    b2 = b2.at[:, :A].set(b2p).at[:, A:A + 1].set(b2v)

    return dict(w1=w1.astype(mm_dtype), b1=b1,
                w2=w2.astype(mm_dtype), b2=b2,
                obs=obs, hidden=H, action_space=A,
                h_pad=H_PAD, out_pad=OUT_PAD, mm_dtype=mm_dtype)


# ---------------------------------------------------------------------------
# Batch tiling
# ---------------------------------------------------------------------------
def _choose_batch_tile(B, batch_tile):
    """Rows per grid step: >= 2 (even #) steps so v7x's 2 TCs both get work,
    <= ~batch_tile rows/step so v5e/v6e don't pay per-step overhead on tiny
    tiles. VMEM is never a constraint here (even TB=2048 is ~2 MiB of tiles)."""
    n_steps = max(2, _cdiv(B, batch_tile))
    n_steps = 2 * _cdiv(n_steps, 2)                  # even step count
    tb = _round_up(_cdiv(B, n_steps), 16)            # sublane-aligned
    return max(16, min(tb, _round_up(B, 16)))


# ---------------------------------------------------------------------------
# Wrapper
# ---------------------------------------------------------------------------
def policy_network_forward(state, fused, *, batch_tile=1024, grid_threshold=256):
    """state: [B, obs] f32.  fused: output of prepare_fused_params."""
    B, obs = state.shape
    A = fused["action_space"]
    H_PAD, OUT_PAD = fused["h_pad"], fused["out_pad"]
    kernel = _make_kernel(A)

    args = (state, fused["w1"], fused["b1"], fused["w2"], fused["b2"])
    # bf16 output slab: only A+1 of OUT_PAD columns carry data, so halving the
    # per-column bytes halves the dominant HBM writeback traffic.
    out_shape = jax.ShapeDtypeStruct((B, OUT_PAD), jnp.bfloat16)

    if B < grid_threshold:
        # Tiny rollout batch: single program, everything resident in VMEM,
        # no grid/step overhead.
        vmem = pl.BlockSpec(memory_space=pltpu.MemorySpace.VMEM)
        out = pl.pallas_call(
            kernel,
            out_shape=out_shape,
            in_specs=[vmem] * len(args),
            out_specs=vmem,
        )(*args)
    else:
        TB = _choose_batch_tile(B, batch_tile)
        out = pl.pallas_call(
            kernel,
            out_shape=out_shape,
            grid=(pl.cdiv(B, TB),),                               # ragged last block OK
            in_specs=[
                pl.BlockSpec((TB, obs), lambda i: (i, 0)),        # x: tiled batch
                pl.BlockSpec((obs, H_PAD), lambda i: (0, 0)),     # weights resident
                pl.BlockSpec((1, H_PAD), lambda i: (0, 0)),
                pl.BlockSpec((H_PAD, OUT_PAD), lambda i: (0, 0)),
                pl.BlockSpec((1, OUT_PAD), lambda i: (0, 0)),
            ],
            out_specs=pl.BlockSpec((TB, OUT_PAD), lambda i: (i, 0)),
            compiler_params=pltpu.CompilerParams(
                dimension_semantics=("parallel",)),               # megacore / v7x 2TC
        )(*args)

    # Garbage rows from the padded last tile never exist here: out_shape's
    # leading dim is exactly B and OOB block writes are dropped by Pallas.
    pol = out[:, :A].astype(jnp.float32)
    val = out[:, A:A + 1].astype(jnp.float32)
    return pol, val


# ---------------------------------------------------------------------------
# Pure-JAX f32 reference (matches PyTorch module semantics)
# ---------------------------------------------------------------------------
def reference_forward(state, p):
    def leaky(x):
        return jnp.where(x > 0, x, 0.01 * x)

    h = leaky(state @ p["w1p"] + p["b1p"])
    logits = h @ p["w2p"] + p["b2p"]
    pol = logits / (1.0 + jnp.abs(logits))
    hv = leaky(state @ p["w1v"] + p["b1v"])
    val = hv @ p["w2v"] + p["b2v"]
    return pol, val


if __name__ == "__main__":
    obs_space, hidden_dim, action_space = 16, 32, 4

    key = jax.random.PRNGKey(0)
    k_params, k_small, k_big = jax.random.split(key, 3)
    params = init_params(k_params, obs_space, hidden_dim, action_space)
    fused = prepare_fused_params(params)          # f32 weights (MXU not the bottleneck)

    # --- tiny rollout batch (single program, no grid) -----------------------
    batch = 8
    state = jax.random.normal(k_small, (batch, obs_space), jnp.float32)
    pol, val = policy_network_forward(state, fused)
    jax.block_until_ready((pol, val))

    ref_pol, ref_val = reference_forward(state, params)
    assert pol.shape == (batch, action_space)
    assert val.shape == (batch, 1)
    # f32 matmuls + exact softsign; only bf16 output rounding remains.
    assert jnp.allclose(pol, ref_pol, atol=2e-2, rtol=2e-2)
    assert jnp.allclose(val, ref_val, atol=2e-2, rtol=2e-2)

    # --- larger training batch (gridded, weights resident, 2 parallel steps) -
    big_batch = 1000                       # not a tile multiple -> ragged last block
    state_big = jax.random.normal(k_big, (big_batch, obs_space), jnp.float32)
    pol_b, val_b = policy_network_forward(state_big, fused)
    jax.block_until_ready((pol_b, val_b))

    ref_pol_b, ref_val_b = reference_forward(state_big, params)
    assert pol_b.shape == (big_batch, action_space)
    assert val_b.shape == (big_batch, 1)
    assert jnp.allclose(pol_b, ref_pol_b, atol=2e-2, rtol=2e-2)
    assert jnp.allclose(val_b, ref_val_b, atol=2e-2, rtol=2e-2)

    print("KERNEL_OK")
</pallas_src>

<mosaic_0001>
module attributes {stable_mosaic.version = 11 : i64} {
  func.func @kernel(%arg0: memref<8x16xf32, #tpu.memory_space<vmem>>, %arg1: memref<16x128xf32, #tpu.memory_space<vmem>>, %arg2: memref<1x128xf32, #tpu.memory_space<vmem>>, %arg3: memref<128x128xf32, #tpu.memory_space<vmem>>, %arg4: memref<1x128xf32, #tpu.memory_space<vmem>>, %arg5: memref<8x128xbf16, #tpu.memory_space<vmem>>) attributes {dimension_semantics = [], scalar_prefetch = 0 : i64, scratch_operands = 0 : i64, tpu.core_type = #tpu.core_type<tc>} {
    %c0 = arith.constant 0 : index
    %c0_0 = arith.constant 0 : index
    %0 = vector.load %arg0[%c0, %c0_0] : memref<8x16xf32, #tpu.memory_space<vmem>>, vector<8x16xf32>
    %c0_1 = arith.constant 0 : index
    %c0_2 = arith.constant 0 : index
    %1 = vector.load %arg1[%c0_1, %c0_2] : memref<16x128xf32, #tpu.memory_space<vmem>>, vector<16x128xf32>
    %cst = arith.constant dense<0.000000e+00> : vector<8x128xf32>
    %2 = tpu.matmul %0, %1, %cst {dimension_numbers = #tpu.dot_dimension_numbers<[1], [0], [0], [1], [0, 0, 1, 1], [], []>} : vector<8x16xf32>, vector<16x128xf32>, vector<8x128xf32> -> vector<8x128xf32>
    %c0_3 = arith.constant 0 : index
    %c0_4 = arith.constant 0 : index
    %3 = vector.load %arg2[%c0_3, %c0_4] : memref<1x128xf32, #tpu.memory_space<vmem>>, vector<1x128xf32>
    %4 = vector.broadcast %3 : vector<1x128xf32> to vector<8x128xf32>
    %5 = arith.addf %2, %4 : vector<8x128xf32>
    %cst_5 = arith.constant 0.00999999977 : f32
    %6 = vector.broadcast %cst_5 : f32 to vector<8x128xf32>
    %7 = arith.mulf %6, %5 : vector<8x128xf32>
    %8 = arith.maximumf %5, %7 : vector<8x128xf32>
    %c0_6 = arith.constant 0 : index
    %c0_7 = arith.constant 0 : index
    %9 = vector.load %arg3[%c0_6, %c0_7] : memref<128x128xf32, #tpu.memory_space<vmem>>, vector<128x128xf32>
    %cst_8 = arith.constant dense<0.000000e+00> : vector<8x128xf32>
    %10 = tpu.matmul %8, %9, %cst_8 {dimension_numbers = #tpu.dot_dimension_numbers<[1], [0], [0], [1], [0, 0, 1, 1], [], []>} : vector<8x128xf32>, vector<128x128xf32>, vector<8x128xf32> -> vector<8x128xf32>
    %c0_9 = arith.constant 0 : index
    %c0_10 = arith.constant 0 : index
    %11 = vector.load %arg4[%c0_9, %c0_10] : memref<1x128xf32, #tpu.memory_space<vmem>>, vector<1x128xf32>
    %12 = vector.broadcast %11 : vector<1x128xf32> to vector<8x128xf32>
    %13 = arith.addf %10, %12 : vector<8x128xf32>
    %14 = math.absf %13 : vector<8x128xf32>
    %cst_11 = arith.constant 1.000000e+00 : f32
    %15 = vector.broadcast %cst_11 : f32 to vector<8x128xf32>
    %16 = arith.addf %15, %14 : vector<8x128xf32>
    %17 = arith.divf %13, %16 : vector<8x128xf32>
    %18 = tpu.iota {dimensions = array<i32: 1>} : vector<1x128xi32>
    %c4_i32 = arith.constant 4 : i32
    %19 = vector.broadcast %c4_i32 : i32 to vector<1x128xi32>
    %20 = arith.cmpi slt, %18, %19 : vector<1x128xi32>
    %21 = vector.shape_cast %20 : vector<1x128xi1> to vector<1x128xi1>
    %22 = vector.broadcast %21 : vector<1x128xi1> to vector<8x128xi1>
    %23 = arith.select %22, %17, %13 : vector<8x128xi1>, vector<8x128xf32>
    %24 = arith.truncf %23 : vector<8x128xf32> to vector<8x128xbf16>
    %c0_12 = arith.constant 0 : index
    %c0_13 = arith.constant 0 : index
    %25 = vector.load %arg5[%c0_12, %c0_13] : memref<8x128xbf16, #tpu.memory_space<vmem>>, vector<8x128xbf16>
    tpu.vector_store %arg5[%c0_12, %c0_13], %24 {strides = array<i32>} : memref<8x128xbf16, #tpu.memory_space<vmem>>, vector<8x128xbf16>,
    return
  }
}

</mosaic_0001>

<llo_original>
// kernel: tpu_custom_call.1
$region0: #{tpu_custom_call.1}
  #allocation0 [shape = 'u32[]', space=smem, size = 0x4, offset = 0x4, fixed_abs, tag = 'smem constant byte address 0x4 - core index']
  #allocation1 [shape = 'u32[144,128]{1,0:T(1,128)}', space=vmem, size = 0x12000, scoped, tag = 'internal scratch']
  %s0 = inlined_call_operand.hbm [shape: f32[8,16], index: 0, kind: input, shape index: {}]
  %s1 = inlined_call_operand.hbm [shape: f32[16,128], index: 1, kind: input, shape index: {}]
  %s2 = inlined_call_operand.vmem [shape: f32[1,128], index: 2, kind: input, shape index: {}]
  %s3 = inlined_call_operand.hbm [shape: f32[128,128], index: 3, kind: input, shape index: {}]
  %s4 = inlined_call_operand.vmem [shape: f32[1,128], index: 4, kind: input, shape index: {}]
  %s5 = inlined_call_operand.hbm [shape: bf16[8,128], index: 5, kind: output, shape index: {}]
  %s6 = sld [smem:[#allocation0]]
  $region42: #{tpu_custom_call.1} parent=0
    _
  %s8 = ssub.s32 1, %s6
  %s9 = scalar_select 0, %s8, %s6
  $region1: #{tpu_custom_call.1} parent=0
    #allocation2 [shape = 'u8[4096]{0}', space=vmem, size = 0x1000, scoped, tag = 'input window, operand 0, single buffered']
    #allocation3 [shape = 's32[1]{0}', space=sflag, size = 0x4, scoped, tag = 'scoped memory for tpu_custom_call.1']
    #allocation4 [shape = 's32[1]{0}', space=sflag, size = 0x4, scoped, tag = 'scoped memory for tpu_custom_call.1']
    #allocation5 [shape = 'u8[8192]{0}', space=vmem, size = 0x2000, scoped, tag = 'input window, operand 1, single buffered']
    #allocation6 [shape = 's32[1]{0}', space=sflag, size = 0x4, scoped, tag = 'scoped memory for tpu_custom_call.1']
    #allocation7 [shape = 'u8[65536]{0}', space=vmem, size = 0x10000, scoped, tag = 'input window, operand 3, single buffered']
    #allocation8 [shape = 'u8[2048]{0}', space=vmem, size = 0x800, scoped, tag = 'output window, operand 0, single buffered']
    %10 = vsyncpa [#allocation3], 0
    %11 = vsyncpa [#allocation6], 0
    %12 = vsyncpa [#allocation4], 0
    // Predicated region
    $region2: #{tpu_custom_call.1} parent=1 // pred_check
      _
    $region3: #{tpu_custom_call.1} parent=1 // pred_check_branch
      %14 = sbr.rel (0) target = $region5
    $region4: #{tpu_custom_call.1} parent=1 // pred_region
      %s16 = ssub.s32 128, 128
      %17 = vsyncadd [#allocation3], %s16
      %s19 = sshll.u32 [#allocation2], 4
      %s20 = int_to_ptr.vmem [resolvable:$true] %s19
      %22 = dma.hbm_to_vmem [thread:$0]  %s0, 128, %s20, [#allocation3]
    $region5: #{tpu_custom_call.1} parent=1 // pred_fallthru
      _
    // Predicated region
    $region6: #{tpu_custom_call.1} parent=1 // pred_check
      _
    $region7: #{tpu_custom_call.1} parent=1 // pred_check_branch
      %24 = sbr.rel (0) target = $region9
    $region8: #{tpu_custom_call.1} parent=1 // pred_region
      %s26 = ssub.s32 256, 256
      %27 = vsyncadd [#allocation6], %s26
      %s28 = sshll.u32 [#allocation5], 4
      %s29 = int_to_ptr.vmem [resolvable:$true] %s28
      %34 = dma.hbm_to_vmem [thread:$0]  %s1, 256, %s29, [#allocation6], 128, 128, 8
    $region9: #{tpu_custom_call.1} parent=1 // pred_fallthru
      _
    // Predicated region
    $region10: #{tpu_custom_call.1} parent=1 // pred_check
      _
    $region11: #{tpu_custom_call.1} parent=1 // pred_check_branch
      %36 = sbr.rel (0) target = $region13
    $region12: #{tpu_custom_call.1} parent=1 // pred_region
      _
    $region13: #{tpu_custom_call.1} parent=1 // pred_fallthru
      _
    // Predicated region
    $region14: #{tpu_custom_call.1} parent=1 // pred_check
      _
    $region15: #{tpu_custom_call.1} parent=1 // pred_check_branch
      %38 = sbr.rel (0) target = $region17
    $region16: #{tpu_custom_call.1} parent=1 // pred_region
      %s40 = ssub.s32 2048, 2048
      %41 = vsyncadd [#allocation6], %s40
      %s42 = sshll.u32 [#allocation7], 4
      %s43 = int_to_ptr.vmem [resolvable:$true] %s42
      %48 = dma.hbm_to_vmem [thread:$0]  %s3, 2048, %s43, [#allocation6], 128, 128, 8
    $region17: #{tpu_custom_call.1} parent=1 // pred_fallthru
      _
    // Predicated region
    $region18: #{tpu_custom_call.1} parent=1 // pred_check
      _
    $region19: #{tpu_custom_call.1} parent=1 // pred_check_branch
      %50 = sbr.rel (0) target = $region21
    $region20: #{tpu_custom_call.1} parent=1 // pred_region
      _
    $region21: #{tpu_custom_call.1} parent=1 // pred_fallthru
      _
    // Predicated region
    $region22: #{tpu_custom_call.1} parent=1 // pred_check
      _
    $region23: #{tpu_custom_call.1} parent=1 // pred_check_branch
      %52 = sbr.rel (0) target = $region25
    $region24: #{tpu_custom_call.1} parent=1 // pred_region
      %53 = dma.done [#allocation3], 128
    $region25: #{tpu_custom_call.1} parent=1 // pred_fallthru
      _
    // Predicated region
    $region26: #{tpu_custom_call.1} parent=1 // pred_check
      _
    $region27: #{tpu_custom_call.1} parent=1 // pred_check_branch
      %55 = sbr.rel (0) target = $region29
    $region28: #{tpu_custom_call.1} parent=1 // pred_region
      %56 = dma.done [#allocation6], 256
    $region29: #{tpu_custom_call.1} parent=1 // pred_fallthru
      _
    // Predicated region
    $region30: #{tpu_custom_call.1} parent=1 // pred_check
      _
    $region31: #{tpu_custom_call.1} parent=1 // pred_check_branch
      %58 = sbr.rel (0) target = $region33
    $region32: #{tpu_custom_call.1} parent=1 // pred_region
      %59 = dma.done [#allocation6], 2048
    $region33: #{tpu_custom_call.1} parent=1 // pred_fallthru
      _
    %v60 = vld [vmem:[#allocation2] sm:$0xff]
    %v61 = vld [vmem:[#allocation5] sm:$0xff]
    %v62 = vld [vmem:[#allocation5 + $0x8] sm:$0xff]
    %v63 = vld [vmem:[%s2] sm:$0x1]
    %v65 = vlaneseq
    %v66 = vshrl.u32 %v65, 7
    %v67 = vsub.s32 0, %v66
    %v68 = vrot.slane %v63, %v67
    %vm70 = vcmask 130048
    %v72 = vsel %vm70, %v60, 0
    %74 = vmatprep.subr.mxu0 0.0
    %75 = vmatpush1.msra.mxu0 0.0
    %76 = vmatprep.subr.mxu0 0.0
    %77 = vmatpush1.msra.mxu0 0.0
    %78 = vmatprep.subr.mxu0 0.0
    %79 = vmatpush1.msra.mxu0 0.0
    %80 = vmatprep.subr.mxu0 0.0
    %81 = vmatpush1.msra.mxu0 0.0
    %82 = vmatprep.subr.mxu0 0.0
    %83 = vmatpush1.msra.mxu0 0.0
    %84 = vmatprep.subr.mxu0 0.0
    %85 = vmatpush1.msra.mxu0 0.0
    %86 = vmatprep.subr.mxu0 0.0
    %87 = vmatpush1.msra.mxu0 0.0
    %88 = vmatprep.subr.mxu0 0.0
    %89 = vmatpush1.msra.mxu0 0.0
    %90 = vmatprep.subr.mxu0 0.0
    %91 = vmatpush1.msra.mxu0 0.0
    %92 = vmatprep.subr.mxu0 0.0
    %93 = vmatpush1.msra.mxu0 0.0
    %94 = vmatprep.subr.mxu0 0.0
    %95 = vmatpush1.msra.mxu0 0.0
    %96 = vmatprep.subr.mxu0 0.0
    %97 = vmatpush1.msra.mxu0 0.0
    %98 = vmatprep.subr.mxu0 0.0
    %99 = vmatpush1.msra.mxu0 0.0
    %100 = vmatprep.subr.mxu0 0.0
    %101 = vmatpush1.msra.mxu0 0.0
    %102 = vmatprep.subr.mxu0 0.0
    %103 = vmatpush1.msra.mxu0 %v62
    %104 = vmatprep.subr.mxu0 0.0
    %105 = vmatpush1.msra.mxu0 %v61
    %106 = vmatprep.subr.mxu0 0.0
    %107 = vmatpush2.msra.mxu0 0.0
    %108 = vmatprep.subr.mxu0 0.0
    %109 = vmatpush2.msra.mxu0 0.0
    %110 = vmatprep.subr.mxu0 0.0
    %111 = vmatpush2.msra.mxu0 0.0
    %112 = vmatprep.subr.mxu0 0.0
    %113 = vmatpush2.msra.mxu0 0.0
    %114 = vmatprep.subr.mxu0 0.0
    %115 = vmatpush2.msra.mxu0 0.0
    %116 = vmatprep.subr.mxu0 0.0
    %117 = vmatpush2.msra.mxu0 0.0
    %118 = vmatprep.subr.mxu0 0.0
    %119 = vmatpush2.msra.mxu0 0.0
    %120 = vmatprep.subr.mxu0 0.0
    %121 = vmatpush2.msra.mxu0 0.0
    %122 = vmatprep.subr.mxu0 0.0
    %123 = vmatpush2.msra.mxu0 0.0
    %124 = vmatprep.subr.mxu0 0.0
    %125 = vmatpush2.msra.mxu0 0.0
    %126 = vmatprep.subr.mxu0 0.0
    %127 = vmatpush2.msra.mxu0 0.0
    %128 = vmatprep.subr.mxu0 0.0
    %129 = vmatpush2.msra.mxu0 0.0
    %130 = vmatprep.subr.mxu0 0.0
    %131 = vmatpush2.msra.mxu0 0.0
    %132 = vmatprep.subr.mxu0 0.0
    %133 = vmatpush2.msra.mxu0 0.0
    %134 = vmatprep.subr.mxu0 0.0
    %135 = vmatpush2.msra.mxu0 0.0
    %136 = vmatprep.subr.mxu0 0.0
    %137 = vmatpush2.msra.mxu0 0.0
    %138 = vmatprep.mubr.f32.mxu0 0.0
    %139 = vmatmul.mubr.f32.gmra.mxu0 %v72
    %v140 = vpop.f32.mrf.mxu0
    %v141 = vadd.f32 %v68, %v140
    %v142 = vpop.f32.mrf.mxu0
    %143 = vdwg.mxu0
    %v144 = vmul.f32 %v141, 0.01
    %v145 = vmax.f32 %v141, %v144
    %v146 = vld [vmem:[#allocation7] sm:$0xff]
    %v147 = vld [vmem:[#allocation7 + $0x8] sm:$0xff]
    %v148 = vld [vmem:[#allocation7 + $0x10] sm:$0xff]
    %v149 = vld [vmem:[#allocation7 + $0x18] sm:$0xff]
    %v150 = vld [vmem:[#allocation7 + $0x20] sm:$0xff]
    %v151 = vld [vmem:[#allocation7 + $0x28] sm:$0xff]
    %v152 = vld [vmem:[#allocation7 + $0x30] sm:$0xff]
    %v153 = vld [vmem:[#allocation7 + $0x38] sm:$0xff]
    %v154 = vld [vmem:[#allocation7 + $0x40] sm:$0xff]
    %v155 = vld [vmem:[#allocation7 + $0x48] sm:$0xff]
    %v156 = vld [vmem:[#allocation7 + $0x50] sm:$0xff]
    %v157 = vld [vmem:[#allocation7 + $0x58] sm:$0xff]
    %v158 = vld [vmem:[#allocation7 + $0x60] sm:$0xff]
    %v159 = vld [vmem:[#allocation7 + $0x68] sm:$0xff]
    %v160 = vld [vmem:[#allocation7 + $0x70] sm:$0xff]
    %v161 = vld [vmem:[#allocation7 + $0x78] sm:$0xff]
    %v162 = vld [vmem:[%s4] sm:$0x1]
    %v164 = vlaneseq
    %v165 = vshrl.u32 %v164, 7
    %v166 = vsub.s32 0, %v165
    %v167 = vrot.slane %v162, %v166
    %169 = vmatprep.subr.mxu0 0.0
    %170 = vmatpush1.msra.mxu0 %v161
    %171 = vmatprep.subr.mxu0 0.0
    %172 = vmatpush1.msra.mxu0 %v160
    %173 = vmatprep.subr.mxu0 0.0
    %174 = vmatpush1.msra.mxu0 %v159
    %175 = vmatprep.subr.mxu0 0.0
    %176 = vmatpush1.msra.mxu0 %v158
    %177 = vmatprep.subr.mxu0 0.0
    %178 = vmatpush1.msra.mxu0 %v157
    %179 = vmatprep.subr.mxu0 0.0
    %180 = vmatpush1.msra.mxu0 %v156
    %181 = vmatprep.subr.mxu0 0.0
    %182 = vmatpush1.msra.mxu0 %v155
    %183 = vmatprep.subr.mxu0 0.0
    %184 = vmatpush1.msra.mxu0 %v154
    %185 = vmatprep.subr.mxu0 0.0
    %186 = vmatpush1.msra.mxu0 %v153
    %187 = vmatprep.subr.mxu0 0.0
    %188 = vmatpush1.msra.mxu0 %v152
    %189 = vmatprep.subr.mxu0 0.0
    %190 = vmatpush1.msra.mxu0 %v151
    %191 = vmatprep.subr.mxu0 0.0
    %192 = vmatpush1.msra.mxu0 %v150
    %193 = vmatprep.subr.mxu0 0.0
    %194 = vmatpush1.msra.mxu0 %v149
    %195 = vmatprep.subr.mxu0 0.0
    %196 = vmatpush1.msra.mxu0 %v148
    %197 = vmatprep.subr.mxu0 0.0
    %198 = vmatpush1.msra.mxu0 %v147
    %199 = vmatprep.subr.mxu0 0.0
    %200 = vmatpush1.msra.mxu0 %v146
    %201 = vmatprep.subr.mxu0 0.0
    %202 = vmatpush2.msra.mxu0 0.0
    %203 = vmatprep.subr.mxu0 0.0
    %204 = vmatpush2.msra.mxu0 0.0
    %205 = vmatprep.subr.mxu0 0.0
    %206 = vmatpush2.msra.mxu0 0.0
    %207 = vmatprep.subr.mxu0 0.0
    %208 = vmatpush2.msra.mxu0 0.0
    %209 = vmatprep.subr.mxu0 0.0
    %210 = vmatpush2.msra.mxu0 0.0
    %211 = vmatprep.subr.mxu0 0.0
    %212 = vmatpush2.msra.mxu0 0.0
    %213 = vmatprep.subr.mxu0 0.0
    %214 = vmatpush2.msra.mxu0 0.0
    %215 = vmatprep.subr.mxu0 0.0
    %216 = vmatpush2.msra.mxu0 0.0
    %217 = vmatprep.subr.mxu0 0.0
    %218 = vmatpush2.msra.mxu0 0.0
    %219 = vmatprep.subr.mxu0 0.0
    %220 = vmatpush2.msra.mxu0 0.0
    %221 = vmatprep.subr.mxu0 0.0
    %222 = vmatpush2.msra.mxu0 0.0
    %223 = vmatprep.subr.mxu0 0.0
    %224 = vmatpush2.msra.mxu0 0.0
    %225 = vmatprep.subr.mxu0 0.0
    %226 = vmatpush2.msra.mxu0 0.0
    %227 = vmatprep.subr.mxu0 0.0
    %228 = vmatpush2.msra.mxu0 0.0
    %229 = vmatprep.subr.mxu0 0.0
    %230 = vmatpush2.msra.mxu0 0.0
    %231 = vmatprep.subr.mxu0 0.0
    %232 = vmatpush2.msra.mxu0 0.0
    %233 = vmatprep.mubr.f32.mxu0 0.0
    %234 = vmatmul.mubr.f32.gmra.mxu0 %v145
    %v235 = vpop.f32.mrf.mxu0
    %v236 = vadd.f32 %v167, %v235
    %v237 = vpop.f32.mrf.mxu0
    %238 = vdwg.mxu0
    %v239 = vand.u32 2147483647, %v236
    %v240 = vadd.f32 %v239, 1.0
    %v241 = vrcp.pop %v240
    %v242 = vmul.f32 %v236, %v241
    %v243 = vlaneseq
    %v244 = vand.u32 %v243, 127
    %vm245 = vcmp.lt.s32.totalorder %v244, 4
    %v246 = vsel %vm245, 1, 0
    %vm247 = vcmp.eq.s32.totalorder %v246, 1
    %v248 = vsel %vm247, %v242, %v236
    %v249 = vpack.c.bf16 %v248, %v248
    %250 = vst [vmem:[#allocation8] sm:$0xf] %v249
    // Predicated region
    $region34: #{tpu_custom_call.1} parent=1 // pred_check
      _
    $region35: #{tpu_custom_call.1} parent=1 // pred_check_branch
      %252 = sbr.rel (0) target = $region37
    $region36: #{tpu_custom_call.1} parent=1 // pred_region
      %s254 = ssub.s32 64, 64
      %255 = vsyncadd [#allocation4], %s254
      %s257 = sshll.u32 [#allocation8], 4
      %s258 = int_to_ptr.vmem [resolvable:$true] %s257
      %260 = dma.vmem_to_hbm [thread:$0]  %s258, 64, %s5, [#allocation4]
    $region37: #{tpu_custom_call.1} parent=1 // pred_fallthru
      _
    // Predicated region
    $region38: #{tpu_custom_call.1} parent=1 // pred_check
      _
    $region39: #{tpu_custom_call.1} parent=1 // pred_check_branch
      %262 = sbr.rel (0) target = $region41
    $region40: #{tpu_custom_call.1} parent=1 // pred_region
      %263 = dma.done [#allocation4], 64
    $region41: #{tpu_custom_call.1} parent=1 // pred_fallthru
      _
    %264 = vsyncpa [#allocation3], 1
    %265 = vsyncpa [#allocation6], 1
    %266 = vsyncpa [#allocation4], 1

</llo_original>
